<compile_context>
chip_gen: v5e
topology: v5e:2x2
jax: 0.10.0
libtpu: 0.0.40
codegen_flags: <defaults>
</compile_context>

<pallas_src>
import functools

import jax
import jax.numpy as jnp
from jax.experimental import pallas as pl
from jax.experimental.pallas import tpu as pltpu


def _round_up(x, m):
    return ((x + m - 1) // m) * m


def _fused_mlp_kernel(*refs, num_layers):
    # refs = (x, w_0..w_{L-1}, b_0..b_{L-1}, o)
    x_ref = refs[0]
    w_refs = refs[1:1 + num_layers]
    b_refs = refs[1 + num_layers:1 + 2 * num_layers]
    o_ref = refs[1 + 2 * num_layers]

    acc = x_ref[...]
    for i in range(num_layers):  # static unroll; activation never leaves the core
        w = w_refs[i][...]
        y = jnp.dot(acc.astype(w.dtype), w, preferred_element_type=jnp.float32)
        y = y + b_refs[i][...]          # bias-add in f32 (v5e has no bf16 VPU)
        if i < num_layers - 1:
            y = jnp.maximum(y, 0.0)
        acc = y                         # f32 carried between layers
    o_ref[...] = acc.astype(o_ref.dtype)


class MLPBBoxPallas:
    """JAX/Pallas equivalent of the PyTorch MLP_bbox module (fused forward)."""

    def __init__(self, input_dim, hidden_dim, output_dim, num_layers, key,
                 dtype=jnp.float32):
        self.num_layers = num_layers
        self.input_dim = input_dim
        self.output_dim = output_dim
        self.dtype = dtype

        h = [hidden_dim] * (num_layers - 1)
        in_dims = [input_dim] + h
        out_dims = h + [output_dim]

        # Unpadded params (weight stored as (in, out)), kept for the reference.
        self.params = []
        for n, k in zip(in_dims, out_dims):
            key, wk, bk = jax.random.split(key, 3)
            bound = 1.0 / (n ** 0.5)  # PyTorch default Linear init
            w = jax.random.uniform(wk, (k, n), jnp.float32, -bound, bound)  # (out, in)
            b = jax.random.uniform(bk, (k,), jnp.float32, -bound, bound)
            self.params.append((w.T, b))  # (in, out), (out,)

        # Per-layer padded slabs: out dims padded to 128 lanes; the K dim of
        # layer 0 is the raw input_dim (full-dim lane block is legal), and the
        # K dim of layer i>0 equals the previous layer's padded N.
        self.n_pads = [_round_up(d, 128) for d in out_dims]
        self.k_dims = [input_dim] + self.n_pads[:-1]
        self.w_pad, self.b_pad = [], []
        for i, (w, b) in enumerate(self.params):
            kp, npad = self.k_dims[i], self.n_pads[i]
            din, dout = w.shape
            wp = jnp.zeros((kp, npad), dtype).at[:din, :dout].set(w.astype(dtype))
            bp = jnp.zeros((1, npad), jnp.float32).at[0, :dout].set(b)
            self.w_pad.append(wp)
            self.b_pad.append(bp)

    def __call__(self, x):
        B, Din = x.shape
        assert Din == self.input_dim, (Din, self.input_dim)
        L = self.num_layers
        n_last = self.n_pads[-1]
        x_isz = jnp.dtype(x.dtype).itemsize
        sub = {4: 8, 2: 16, 1: 32}.get(x_isz, 8)  # sublane multiple per dtype

        # Batch tiling: 1 tile for tiny B; >= 2 tiles once B >= 16 (v7x megacore);
        # 512-row tiles for large B to amortize per-grid-step overhead.
        if B < 16:
            tb = _round_up(B, sub)
        elif B <= 1024:
            tb = _round_up(pl.cdiv(B, 2), sub)
        else:
            tb = 512
        grid = pl.cdiv(B, tb)

        # Single-buffer the grid-invariant weight slab only when it is large
        # enough for VMEM headroom to matter (v5e 16 MiB / v7x 32 MiB scoped).
        wbytes = sum(int(w.size) * w.dtype.itemsize for w in self.w_pad)
        bbytes = sum(int(b.size) * 4 for b in self.b_pad)
        single_buf = wbytes > (4 << 20)

        def full_spec(shape):
            if single_buf:
                return pl.BlockSpec(shape, lambda i: (0,) * len(shape),
                                    pipeline_mode=pl.Buffered(1))
            return pl.BlockSpec(shape, lambda i: (0,) * len(shape))

        in_specs = [pl.BlockSpec((tb, Din), lambda i: (i, 0))]
        in_specs += [full_spec(w.shape) for w in self.w_pad]
        in_specs += [full_spec(b.shape) for b in self.b_pad]
        out_spec = pl.BlockSpec((tb, n_last), lambda i: (i, 0))

        flops = 2 * B * sum(w.shape[0] * w.shape[1] for w in self.w_pad)
        bytes_accessed = int(B * Din * x_isz + wbytes + bbytes + B * n_last * x_isz)

        n_wbuf = 1 if single_buf else 2
        vmem_est = (2 * tb * Din * x_isz                      # x double buffer
                    + n_wbuf * (wbytes + bbytes)              # weight/bias slabs
                    + 2 * tb * n_last * x_isz                 # out double buffer
                    + 4 * tb * max(self.n_pads) * 4)          # f32 activation working set
        vmem_limit = int(min(max(vmem_est + (4 << 20), 32 << 20), 100 << 20))
        # TODO(synk): if the weight slab still exceeds the chip's VMEM budget
        # (very large hidden_dim), fall back to K/N-tiled weight streaming.

        out = pl.pallas_call(
            functools.partial(_fused_mlp_kernel, num_layers=L),
            out_shape=jax.ShapeDtypeStruct((B, n_last), x.dtype),
            grid_spec=pl.GridSpec(grid=(grid,), in_specs=in_specs,
                                  out_specs=out_spec),
            compiler_params=pltpu.CompilerParams(
                dimension_semantics=("parallel",),
                vmem_limit_bytes=vmem_limit),
            cost_estimate=pl.CostEstimate(flops=flops, transcendentals=0,
                                          bytes_accessed=bytes_accessed),
        )(x, *self.w_pad, *self.b_pad)

        return out[:, :self.output_dim]


def _reference_forward(params, num_layers, x):
    # Pure-JAX reference of the PyTorch forward (f32).
    for i, (w, b) in enumerate(params):
        x = x @ w + b
        if i < num_layers - 1:
            x = jnp.maximum(x, 0.0)
    return x


if __name__ == "__main__":
    key = jax.random.PRNGKey(0)
    key, xkey, mkey = jax.random.split(key, 3)

    batch = 8
    input_dim = 32
    hidden_dim = 32
    output_dim = 4
    num_layers = 3

    x = jax.random.normal(xkey, (batch, input_dim), jnp.float32)
    mlp = MLPBBoxPallas(input_dim, hidden_dim, output_dim, num_layers, mkey)

    out = jax.block_until_ready(mlp(x))
    ref = _reference_forward(mlp.params, num_layers, x)

    assert out.shape == (batch, output_dim), out.shape
    assert jnp.allclose(out, ref, atol=1e-5, rtol=1e-5), "mismatch vs reference"

    print("KERNEL_OK")
</pallas_src>

<mosaic_0001>
module attributes {stable_mosaic.version = 11 : i64} {
  func.func @_fused_mlp_kernel(%arg0: i32, %arg1: memref<8x32xf32, #tpu.memory_space<vmem>>, %arg2: memref<32x128xf32, #tpu.memory_space<vmem>>, %arg3: memref<128x128xf32, #tpu.memory_space<vmem>>, %arg4: memref<128x128xf32, #tpu.memory_space<vmem>>, %arg5: memref<1x128xf32, #tpu.memory_space<vmem>>, %arg6: memref<1x128xf32, #tpu.memory_space<vmem>>, %arg7: memref<1x128xf32, #tpu.memory_space<vmem>>, %arg8: memref<8x128xf32, #tpu.memory_space<vmem>>) attributes {dimension_semantics = [#tpu.dimension_semantics<parallel>], iteration_bounds = array<i64: 1>, scalar_prefetch = 0 : i64, scratch_operands = 0 : i64, tpu.core_type = #tpu.core_type<tc>, window_params = [{transform_indices = @transform_0, window_bounds = array<i64: 8, 32>}, {pipeline_mode = #tpu.pipeline_mode<synchronous>, transform_indices = @transform_1, window_bounds = array<i64: 32, 128>}, {pipeline_mode = #tpu.pipeline_mode<synchronous>, transform_indices = @transform_2, window_bounds = array<i64: 128, 128>}, {pipeline_mode = #tpu.pipeline_mode<synchronous>, transform_indices = @transform_3, window_bounds = array<i64: 128, 128>}, {pipeline_mode = #tpu.pipeline_mode<synchronous>, transform_indices = @transform_4, window_bounds = array<i64: 1, 128>}, {pipeline_mode = #tpu.pipeline_mode<synchronous>, transform_indices = @transform_5, window_bounds = array<i64: 1, 128>}, {pipeline_mode = #tpu.pipeline_mode<synchronous>, transform_indices = @transform_6, window_bounds = array<i64: 1, 128>}, {transform_indices = @transform_7, window_bounds = array<i64: 8, 128>}]} {
    %c0 = arith.constant 0 : index
    %c0_0 = arith.constant 0 : index
    %0 = vector.load %arg1[%c0, %c0_0] : memref<8x32xf32, #tpu.memory_space<vmem>>, vector<8x32xf32>
    %c0_1 = arith.constant 0 : index
    %c0_2 = arith.constant 0 : index
    %1 = vector.load %arg2[%c0_1, %c0_2] : memref<32x128xf32, #tpu.memory_space<vmem>>, vector<32x128xf32>
    %cst = arith.constant dense<0.000000e+00> : vector<8x128xf32>
    %2 = tpu.matmul %0, %1, %cst {dimension_numbers = #tpu.dot_dimension_numbers<[1], [0], [0], [1], [0, 0, 1, 1], [], []>} : vector<8x32xf32>, vector<32x128xf32>, vector<8x128xf32> -> vector<8x128xf32>
    %c0_3 = arith.constant 0 : index
    %c0_4 = arith.constant 0 : index
    %3 = vector.load %arg5[%c0_3, %c0_4] : memref<1x128xf32, #tpu.memory_space<vmem>>, vector<1x128xf32>
    %4 = vector.broadcast %3 : vector<1x128xf32> to vector<8x128xf32>
    %5 = arith.addf %2, %4 : vector<8x128xf32>
    %cst_5 = arith.constant 0.000000e+00 : f32
    %6 = vector.broadcast %cst_5 : f32 to vector<8x128xf32>
    %7 = arith.maximumf %5, %6 : vector<8x128xf32>
    %c0_6 = arith.constant 0 : index
    %c0_7 = arith.constant 0 : index
    %8 = vector.load %arg3[%c0_6, %c0_7] : memref<128x128xf32, #tpu.memory_space<vmem>>, vector<128x128xf32>
    %cst_8 = arith.constant dense<0.000000e+00> : vector<8x128xf32>
    %9 = tpu.matmul %7, %8, %cst_8 {dimension_numbers = #tpu.dot_dimension_numbers<[1], [0], [0], [1], [0, 0, 1, 1], [], []>} : vector<8x128xf32>, vector<128x128xf32>, vector<8x128xf32> -> vector<8x128xf32>
    %c0_9 = arith.constant 0 : index
    %c0_10 = arith.constant 0 : index
    %10 = vector.load %arg6[%c0_9, %c0_10] : memref<1x128xf32, #tpu.memory_space<vmem>>, vector<1x128xf32>
    %11 = vector.broadcast %10 : vector<1x128xf32> to vector<8x128xf32>
    %12 = arith.addf %9, %11 : vector<8x128xf32>
    %cst_11 = arith.constant 0.000000e+00 : f32
    %13 = vector.broadcast %cst_11 : f32 to vector<8x128xf32>
    %14 = arith.maximumf %12, %13 : vector<8x128xf32>
    %c0_12 = arith.constant 0 : index
    %c0_13 = arith.constant 0 : index
    %15 = vector.load %arg4[%c0_12, %c0_13] : memref<128x128xf32, #tpu.memory_space<vmem>>, vector<128x128xf32>
    %cst_14 = arith.constant dense<0.000000e+00> : vector<8x128xf32>
    %16 = tpu.matmul %14, %15, %cst_14 {dimension_numbers = #tpu.dot_dimension_numbers<[1], [0], [0], [1], [0, 0, 1, 1], [], []>} : vector<8x128xf32>, vector<128x128xf32>, vector<8x128xf32> -> vector<8x128xf32>
    %c0_15 = arith.constant 0 : index
    %c0_16 = arith.constant 0 : index
    %17 = vector.load %arg7[%c0_15, %c0_16] : memref<1x128xf32, #tpu.memory_space<vmem>>, vector<1x128xf32>
    %18 = vector.broadcast %17 : vector<1x128xf32> to vector<8x128xf32>
    %19 = arith.addf %16, %18 : vector<8x128xf32>
    %c0_17 = arith.constant 0 : index
    %c0_18 = arith.constant 0 : index
    %20 = vector.load %arg8[%c0_17, %c0_18] : memref<8x128xf32, #tpu.memory_space<vmem>>, vector<8x128xf32>
    tpu.vector_store %arg8[%c0_17, %c0_18], %19 {strides = array<i32>} : memref<8x128xf32, #tpu.memory_space<vmem>>, vector<8x128xf32>,
    return
  }
  func.func @transform_0(%arg0: i32) -> (i32, i32) {
    %c0_i32 = arith.constant 0 : i32
    %c0_i32_0 = arith.constant 0 : i32
    return %arg0, %c0_i32 : i32, i32
  }
  func.func @transform_1(%arg0: i32) -> (i32, i32) {
    %c0_i32 = arith.constant 0 : i32
    %c0_i32_0 = arith.constant 0 : i32
    %c0_i32_1 = arith.constant 0 : i32
    return %c0_i32, %c0_i32_0 : i32, i32
  }
  func.func @transform_2(%arg0: i32) -> (i32, i32) {
    %c0_i32 = arith.constant 0 : i32
    %c0_i32_0 = arith.constant 0 : i32
    %c0_i32_1 = arith.constant 0 : i32
    return %c0_i32, %c0_i32_0 : i32, i32
  }
  func.func @transform_3(%arg0: i32) -> (i32, i32) {
    %c0_i32 = arith.constant 0 : i32
    %c0_i32_0 = arith.constant 0 : i32
    %c0_i32_1 = arith.constant 0 : i32
    return %c0_i32, %c0_i32_0 : i32, i32
  }
  func.func @transform_4(%arg0: i32) -> (i32, i32) {
    %c0_i32 = arith.constant 0 : i32
    %c0_i32_0 = arith.constant 0 : i32
    %c0_i32_1 = arith.constant 0 : i32
    return %c0_i32, %c0_i32_0 : i32, i32
  }
  func.func @transform_5(%arg0: i32) -> (i32, i32) {
    %c0_i32 = arith.constant 0 : i32
    %c0_i32_0 = arith.constant 0 : i32
    %c0_i32_1 = arith.constant 0 : i32
    return %c0_i32, %c0_i32_0 : i32, i32
  }
  func.func @transform_6(%arg0: i32) -> (i32, i32) {
    %c0_i32 = arith.constant 0 : i32
    %c0_i32_0 = arith.constant 0 : i32
    %c0_i32_1 = arith.constant 0 : i32
    return %c0_i32, %c0_i32_0 : i32, i32
  }
  func.func @transform_7(%arg0: i32) -> (i32, i32) {
    %c0_i32 = arith.constant 0 : i32
    %c0_i32_0 = arith.constant 0 : i32
    return %arg0, %c0_i32 : i32, i32
  }
}

</mosaic_0001>

<llo_original>
// kernel: tpu_custom_call.1
$region0: #{tpu_custom_call.1}
  #allocation0 [shape = 'u32[]', space=smem, size = 0x4, offset = 0x4, fixed_abs, tag = 'smem constant byte address 0x4 - core index']
  #allocation1 [shape = 'u32[72,128]{1,0:T(1,128)}', space=vmem, size = 0x9000, scoped, tag = 'internal scratch']
  %s0 = inlined_call_operand.hbm [shape: f32[8,32], index: 0, kind: input, shape index: {}]
  %s1 = inlined_call_operand.hbm [shape: f32[32,128], index: 1, kind: input, shape index: {}]
  %s2 = inlined_call_operand.hbm [shape: f32[128,128], index: 2, kind: input, shape index: {}]
  %s3 = inlined_call_operand.hbm [shape: f32[128,128], index: 3, kind: input, shape index: {}]
  %s4 = inlined_call_operand.vmem [shape: f32[1,128], index: 4, kind: input, shape index: {}]
  %s5 = inlined_call_operand.vmem [shape: f32[1,128], index: 5, kind: input, shape index: {}]
  %s6 = inlined_call_operand.vmem [shape: f32[1,128], index: 6, kind: input, shape index: {}]
  %s7 = inlined_call_operand.hbm [shape: f32[8,128], index: 7, kind: output, shape index: {}]
  %s8 = sld [smem:[#allocation0]]
  $region54: #{tpu_custom_call.1} parent=0
    _
  %s10 = ssub.s32 1, %s8
  %s11 = scalar_select 0, %s10, %s8
  $region1: #{tpu_custom_call.1} parent=0
    #allocation2 [shape = 'u8[4096]{0}', space=vmem, size = 0x1000, scoped, tag = 'input window, operand 0, single buffered']
    #allocation3 [shape = 's32[1]{0}', space=sflag, size = 0x4, scoped, tag = 'scoped memory for tpu_custom_call.1']
    #allocation4 [shape = 's32[1]{0}', space=sflag, size = 0x4, scoped, tag = 'scoped memory for tpu_custom_call.1']
    #allocation5 [shape = 'u8[16384]{0}', space=vmem, size = 0x4000, scoped, tag = 'input window, operand 1, single buffered']
    #allocation6 [shape = 's32[1]{0}', space=sflag, size = 0x4, scoped, tag = 'scoped memory for tpu_custom_call.1']
    #allocation7 [shape = 'u8[65536]{0}', space=vmem, size = 0x10000, scoped, tag = 'input window, operand 2, single buffered']
    #allocation8 [shape = 'u8[65536]{0}', space=vmem, size = 0x10000, scoped, tag = 'input window, operand 3, single buffered']
    #allocation9 [shape = 's32[1]{0}', space=sflag, size = 0x4, scoped, tag = 'scoped memory for tpu_custom_call.1']
    #allocation10 [shape = 'u8[4096]{0}', space=vmem, size = 0x1000, scoped, tag = 'output window, operand 0, single buffered']
    %12 = vsyncpa [#allocation3], 0
    %13 = vsyncpa [#allocation6], 0
    %14 = vsyncpa [#allocation9], 0
    %15 = vsyncpa [#allocation4], 0
    // Predicated region
    $region2: #{tpu_custom_call.1} parent=1 // pred_check
      _
    $region3: #{tpu_custom_call.1} parent=1 // pred_check_branch
      %17 = sbr.rel (0) target = $region5
    $region4: #{tpu_custom_call.1} parent=1 // pred_region
      %19 = vsyncadd [#allocation3], 0
      %s21 = sshll.u32 %s0, 4
      %s22 = int_to_ptr.hbm [resolvable:$true] %s21
      %s23 = sshll.u32 [#allocation2], 4
      %s24 = int_to_ptr.vmem [resolvable:$true] %s23
      %26 = dma.hbm_to_vmem [thread:$0]  %s22, 128, %s24, [#allocation3]
    $region5: #{tpu_custom_call.1} parent=1 // pred_fallthru
      _
    // Predicated region
    $region6: #{tpu_custom_call.1} parent=1 // pred_check
      _
    $region7: #{tpu_custom_call.1} parent=1 // pred_check_branch
      %28 = sbr.rel (0) target = $region9
    $region8: #{tpu_custom_call.1} parent=1 // pred_region
      %30 = vsyncadd [#allocation6], 0
      %s31 = sshll.u32 %s1, 4
      %s32 = int_to_ptr.hbm [resolvable:$true] %s31
      %s33 = sshll.u32 [#allocation5], 4
      %s34 = int_to_ptr.vmem [resolvable:$true] %s33
      %39 = dma.hbm_to_vmem [thread:$0]  %s32, 512, %s34, [#allocation6], 128, 128, 8
    $region9: #{tpu_custom_call.1} parent=1 // pred_fallthru
      _
    // Predicated region
    $region10: #{tpu_custom_call.1} parent=1 // pred_check
      _
    $region11: #{tpu_custom_call.1} parent=1 // pred_check_branch
      %41 = sbr.rel (0) target = $region13
    $region12: #{tpu_custom_call.1} parent=1 // pred_region
      %43 = vsyncadd [#allocation6], 0
      %s44 = sshll.u32 %s2, 4
      %s45 = int_to_ptr.hbm [resolvable:$true] %s44
      %s46 = sshll.u32 [#allocation7], 4
      %s47 = int_to_ptr.vmem [resolvable:$true] %s46
      %52 = dma.hbm_to_vmem [thread:$0]  %s45, 2048, %s47, [#allocation6], 128, 128, 8
    $region13: #{tpu_custom_call.1} parent=1 // pred_fallthru
      _
    // Predicated region
    $region14: #{tpu_custom_call.1} parent=1 // pred_check
      _
    $region15: #{tpu_custom_call.1} parent=1 // pred_check_branch
      %54 = sbr.rel (0) target = $region17
    $region16: #{tpu_custom_call.1} parent=1 // pred_region
      %56 = vsyncadd [#allocation9], 0
      %s57 = sshll.u32 %s3, 4
      %s58 = int_to_ptr.hbm [resolvable:$true] %s57
      %s59 = sshll.u32 [#allocation8], 4
      %s60 = int_to_ptr.vmem [resolvable:$true] %s59
      %65 = dma.hbm_to_vmem [thread:$0]  %s58, 2048, %s60, [#allocation9], 128, 128, 8
    $region17: #{tpu_custom_call.1} parent=1 // pred_fallthru
      _
    // Predicated region
    $region18: #{tpu_custom_call.1} parent=1 // pred_check
      _
    $region19: #{tpu_custom_call.1} parent=1 // pred_check_branch
      %67 = sbr.rel (0) target = $region21
    $region20: #{tpu_custom_call.1} parent=1 // pred_region
      _
    $region21: #{tpu_custom_call.1} parent=1 // pred_fallthru
      _
    // Predicated region
    $region22: #{tpu_custom_call.1} parent=1 // pred_check
      _
    $region23: #{tpu_custom_call.1} parent=1 // pred_check_branch
      %69 = sbr.rel (0) target = $region25
    $region24: #{tpu_custom_call.1} parent=1 // pred_region
      _
    $region25: #{tpu_custom_call.1} parent=1 // pred_fallthru
      _
    // Predicated region
    $region26: #{tpu_custom_call.1} parent=1 // pred_check
      _
    $region27: #{tpu_custom_call.1} parent=1 // pred_check_branch
      %71 = sbr.rel (0) target = $region29
    $region28: #{tpu_custom_call.1} parent=1 // pred_region
      _
    $region29: #{tpu_custom_call.1} parent=1 // pred_fallthru
      _
    // Predicated region
    $region30: #{tpu_custom_call.1} parent=1 // pred_check
      _
    $region31: #{tpu_custom_call.1} parent=1 // pred_check_branch
      %73 = sbr.rel (0) target = $region33
    $region32: #{tpu_custom_call.1} parent=1 // pred_region
      %75 = dma.done [#allocation3], 128
    $region33: #{tpu_custom_call.1} parent=1 // pred_fallthru
      _
    // Predicated region
    $region34: #{tpu_custom_call.1} parent=1 // pred_check
      _
    $region35: #{tpu_custom_call.1} parent=1 // pred_check_branch
      %77 = sbr.rel (0) target = $region37
    $region36: #{tpu_custom_call.1} parent=1 // pred_region
      %79 = dma.done [#allocation6], 512
    $region37: #{tpu_custom_call.1} parent=1 // pred_fallthru
      _
    // Predicated region
    $region38: #{tpu_custom_call.1} parent=1 // pred_check
      _
    $region39: #{tpu_custom_call.1} parent=1 // pred_check_branch
      %81 = sbr.rel (0) target = $region41
    $region40: #{tpu_custom_call.1} parent=1 // pred_region
      %83 = dma.done [#allocation6], 2048
    $region41: #{tpu_custom_call.1} parent=1 // pred_fallthru
      _
    // Predicated region
    $region42: #{tpu_custom_call.1} parent=1 // pred_check
      _
    $region43: #{tpu_custom_call.1} parent=1 // pred_check_branch
      %85 = sbr.rel (0) target = $region45
    $region44: #{tpu_custom_call.1} parent=1 // pred_region
      %87 = dma.done [#allocation9], 2048
    $region45: #{tpu_custom_call.1} parent=1 // pred_fallthru
      _
    %v88 = vld [vmem:[#allocation2] sm:$0xff]
    %v89 = vld [vmem:[#allocation5] sm:$0xff]
    %v90 = vld [vmem:[#allocation5 + $0x8] sm:$0xff]
    %v91 = vld [vmem:[#allocation5 + $0x10] sm:$0xff]
    %v92 = vld [vmem:[#allocation5 + $0x18] sm:$0xff]
    %v93 = vld [vmem:[%s4] sm:$0x1]
    %v95 = vperm.slane %v93, 0
    %vm97 = vcmask 261120
    %v99 = vsel %vm97, %v88, 0
    %101 = vmatpush.msra.mxu0 0.0
    %102 = vmatpush.msra.mxu0 0.0
    %103 = vmatpush.msra.mxu0 0.0
    %104 = vmatpush.msra.mxu0 0.0
    %105 = vmatpush.msra.mxu0 0.0
    %106 = vmatpush.msra.mxu0 0.0
    %107 = vmatpush.msra.mxu0 0.0
    %108 = vmatpush.msra.mxu0 0.0
    %109 = vmatpush.msra.mxu0 0.0
    %110 = vmatpush.msra.mxu0 0.0
    %111 = vmatpush.msra.mxu0 0.0
    %112 = vmatpush.msra.mxu0 0.0
    %113 = vmatpush.msra.mxu0 %v92
    %114 = vmatpush.msra.mxu0 %v91
    %115 = vmatpush.msra.mxu0 %v90
    %116 = vmatpush.msra.mxu0 %v89
    %117 = vmatmul.f32.gmra.mxu0 %v99
    %v118 = vpop.f32.mrf.mxu0
    %v119 = vadd.f32 %v95, %v118
    %120 = vdwg.mxu0
    %v121 = vmax.f32 %v119, 0.0
    %v122 = vld [vmem:[#allocation7] sm:$0xff]
    %v123 = vld [vmem:[#allocation7 + $0x8] sm:$0xff]
    %v124 = vld [vmem:[#allocation7 + $0x10] sm:$0xff]
    %v125 = vld [vmem:[#allocation7 + $0x18] sm:$0xff]
    %v126 = vld [vmem:[#allocation7 + $0x20] sm:$0xff]
    %v127 = vld [vmem:[#allocation7 + $0x28] sm:$0xff]
    %v128 = vld [vmem:[#allocation7 + $0x30] sm:$0xff]
    %v129 = vld [vmem:[#allocation7 + $0x38] sm:$0xff]
    %v130 = vld [vmem:[#allocation7 + $0x40] sm:$0xff]
    %v131 = vld [vmem:[#allocation7 + $0x48] sm:$0xff]
    %v132 = vld [vmem:[#allocation7 + $0x50] sm:$0xff]
    %v133 = vld [vmem:[#allocation7 + $0x58] sm:$0xff]
    %v134 = vld [vmem:[#allocation7 + $0x60] sm:$0xff]
    %v135 = vld [vmem:[#allocation7 + $0x68] sm:$0xff]
    %v136 = vld [vmem:[#allocation7 + $0x70] sm:$0xff]
    %v137 = vld [vmem:[#allocation7 + $0x78] sm:$0xff]
    %v138 = vld [vmem:[%s5] sm:$0x1]
    %v140 = vperm.slane %v138, 0
    %142 = vmatpush.msra.mxu0 %v137
    %143 = vmatpush.msra.mxu0 %v136
    %144 = vmatpush.msra.mxu0 %v135
    %145 = vmatpush.msra.mxu0 %v134
    %146 = vmatpush.msra.mxu0 %v133
    %147 = vmatpush.msra.mxu0 %v132
    %148 = vmatpush.msra.mxu0 %v131
    %149 = vmatpush.msra.mxu0 %v130
    %150 = vmatpush.msra.mxu0 %v129
    %151 = vmatpush.msra.mxu0 %v128
    %152 = vmatpush.msra.mxu0 %v127
    %153 = vmatpush.msra.mxu0 %v126
    %154 = vmatpush.msra.mxu0 %v125
    %155 = vmatpush.msra.mxu0 %v124
    %156 = vmatpush.msra.mxu0 %v123
    %157 = vmatpush.msra.mxu0 %v122
    %158 = vmatmul.f32.gmra.mxu0 %v121
    %v159 = vpop.f32.mrf.mxu0
    %v160 = vadd.f32 %v140, %v159
    %161 = vdwg.mxu0
    %v162 = vmax.f32 %v160, 0.0
    %v163 = vld [vmem:[#allocation8] sm:$0xff]
    %v164 = vld [vmem:[#allocation8 + $0x8] sm:$0xff]
    %v165 = vld [vmem:[#allocation8 + $0x10] sm:$0xff]
    %v166 = vld [vmem:[#allocation8 + $0x18] sm:$0xff]
    %v167 = vld [vmem:[#allocation8 + $0x20] sm:$0xff]
    %v168 = vld [vmem:[#allocation8 + $0x28] sm:$0xff]
    %v169 = vld [vmem:[#allocation8 + $0x30] sm:$0xff]
    %v170 = vld [vmem:[#allocation8 + $0x38] sm:$0xff]
    %v171 = vld [vmem:[#allocation8 + $0x40] sm:$0xff]
    %v172 = vld [vmem:[#allocation8 + $0x48] sm:$0xff]
    %v173 = vld [vmem:[#allocation8 + $0x50] sm:$0xff]
    %v174 = vld [vmem:[#allocation8 + $0x58] sm:$0xff]
    %v175 = vld [vmem:[#allocation8 + $0x60] sm:$0xff]
    %v176 = vld [vmem:[#allocation8 + $0x68] sm:$0xff]
    %v177 = vld [vmem:[#allocation8 + $0x70] sm:$0xff]
    %v178 = vld [vmem:[#allocation8 + $0x78] sm:$0xff]
    %v179 = vld [vmem:[%s6] sm:$0x1]
    %v181 = vperm.slane %v179, 0
    %183 = vmatpush.msra.mxu0 %v178
    %184 = vmatpush.msra.mxu0 %v177
    %185 = vmatpush.msra.mxu0 %v176
    %186 = vmatpush.msra.mxu0 %v175
    %187 = vmatpush.msra.mxu0 %v174
    %188 = vmatpush.msra.mxu0 %v173
    %189 = vmatpush.msra.mxu0 %v172
    %190 = vmatpush.msra.mxu0 %v171
    %191 = vmatpush.msra.mxu0 %v170
    %192 = vmatpush.msra.mxu0 %v169
    %193 = vmatpush.msra.mxu0 %v168
    %194 = vmatpush.msra.mxu0 %v167
    %195 = vmatpush.msra.mxu0 %v166
    %196 = vmatpush.msra.mxu0 %v165
    %197 = vmatpush.msra.mxu0 %v164
    %198 = vmatpush.msra.mxu0 %v163
    %199 = vmatmul.f32.gmra.mxu0 %v162
    %v200 = vpop.f32.mrf.mxu0
    %v201 = vadd.f32 %v181, %v200
    %202 = vdwg.mxu0
    %203 = vst [vmem:[#allocation10] sm:$0xff] %v201
    // Predicated region
    $region46: #{tpu_custom_call.1} parent=1 // pred_check
      _
    $region47: #{tpu_custom_call.1} parent=1 // pred_check_branch
      %205 = sbr.rel (0) target = $region49
    $region48: #{tpu_custom_call.1} parent=1 // pred_region
      %207 = vsyncadd [#allocation4], 0
      %s209 = sshll.u32 [#allocation10], 4
      %s210 = int_to_ptr.vmem [resolvable:$true] %s209
      %s211 = sshll.u32 %s7, 4
      %s212 = int_to_ptr.hbm [resolvable:$true] %s211
      %214 = dma.vmem_to_hbm [thread:$0]  %s210, 128, %s212, [#allocation4]
    $region49: #{tpu_custom_call.1} parent=1 // pred_fallthru
      _
    // Predicated region
    $region50: #{tpu_custom_call.1} parent=1 // pred_check
      _
    $region51: #{tpu_custom_call.1} parent=1 // pred_check_branch
      %216 = sbr.rel (0) target = $region53
    $region52: #{tpu_custom_call.1} parent=1 // pred_region
      %218 = dma.done [#allocation4], 128
    $region53: #{tpu_custom_call.1} parent=1 // pred_fallthru
      _
    %219 = vsyncpa [#allocation3], 1
    %220 = vsyncpa [#allocation6], 1
    %221 = vsyncpa [#allocation9], 1
    %222 = vsyncpa [#allocation4], 1

</llo_original>
